<compile_context>
chip_gen: v7x
topology: tpu7x:2x2x1
jax: 0.10.0
libtpu: 0.0.40
codegen_flags: <defaults>
</compile_context>

<pallas_src>
import jax
import jax.numpy as jnp
from jax.experimental import pallas as pl
from jax.experimental.pallas import tpu as pltpu

LANE = 128
_MIN_STEPS = 4                    # target grid steps for pipeline overlap
_SMALL_SLAB_BYTES = 512 * 1024    # below this (per array) a single block is fine
_MiB = 1024 * 1024


# ----------------------------------------------------------------------------
# Kernels (pure elementwise, memory-bound)
# ----------------------------------------------------------------------------
def _grad_type1_kernel(coef_ref, x_ref, xpred_ref, xobs_ref, mask_ref, o_ref):
    # coef_ref (SMEM, shape (2,), f32): [2*alphaAE^2/N, 2*alphaObs^2/sum(mask)]
    c_ae = coef_ref[0]
    c_obs = coef_ref[1]
    x = x_ref[...].astype(jnp.float32)
    xpred = xpred_ref[...].astype(jnp.float32)
    xobs = xobs_ref[...].astype(jnp.float32)
    m = mask_ref[...].astype(jnp.float32)
    g = c_ae * (x - xpred) + (c_obs * m) * (x - xobs)
    o_ref[...] = g.astype(o_ref.dtype)


def _grad_type0_kernel(coef_ref, x_ref, xpred_ref, xobs_ref, o_ref):
    # coef_ref (SMEM, shape (2,), f32): [alphaAE, alphaObs]
    # Algebraic simplification: (xpred - x) + (x - xobs) == xpred - xobs.
    a_ae = coef_ref[0]
    a_obs = coef_ref[1]
    x = x_ref[...].astype(jnp.float32)
    xpred = xpred_ref[...].astype(jnp.float32)
    xobs = xobs_ref[...].astype(jnp.float32)
    g = a_ae * (xpred - xobs) + a_obs * (x - xobs)
    o_ref[...] = g.astype(o_ref.dtype)


# ----------------------------------------------------------------------------
# Layout / tiling helpers
# ----------------------------------------------------------------------------
def _cdiv(a, b):
    return -(-a // b)


def _round_down_32(v):
    return max(32, (v // 32) * 32)


def _round_up_32(v):
    return max(32, _cdiv(v, 32) * 32)


def _tile_elem_budget():
    """Per-array tile element budget, generation-aware (best effort)."""
    kind = ""
    try:
        kind = jax.devices()[0].device_kind.lower()
    except Exception:
        pass
    if "v6" in kind:
        # v6e: 128 MiB physical VMEM -> ~4 MiB/array tiles (vmem_limit raised)
        return 1024 * 1024
    if "v7" in kind or "7x" in kind:
        # v7x: 64 MiB physical VMEM, 3.2 TB/s HBM -> ~2 MiB/array tiles
        return 512 * 1024
    # v5e / unknown generation: conservative ~1 MiB/array tiles
    return 256 * 1024


def _choose_layout(n, itemsize, budget_elems):
    """Pick (rows, lanes, tm, n_pad) for a lane-dense (rows, lanes) slab.

    - lanes: widest multiple of 128 (up to 1024) that still leaves >= 32 rows.
    - n_pad: slab element count after padding n up to rows*lanes.
    - tm: multiple-of-32 tile height; slabs > _SMALL_SLAB_BYTES get >= 4 grid
      steps (even count preferred) so DMA/compute overlap and v7x's 2 cores
      both get work.  Ragged last block is handled by Pallas (cdiv grid).
    """
    lanes = LANE
    for cand in (1024, 512, 256):
        if _cdiv(n, cand) >= 32:
            lanes = cand
            break
    rows = _cdiv(n, lanes)
    n_pad = rows * lanes

    tm_budget = _round_down_32(max(32, budget_elems // lanes))
    slab_bytes = rows * lanes * itemsize

    if rows <= tm_budget and slab_bytes <= _SMALL_SLAB_BYTES:
        # Tiny slab: single full-extent block (pipelining gains nothing).
        return rows, lanes, rows, n_pad

    # Large slab: cap tm so grid = cdiv(rows, tm) >= _MIN_STEPS.
    tm_steps = _round_down_32(_cdiv(rows, _MIN_STEPS))
    tm = min(tm_budget, tm_steps)

    # Prefer an even grid (v7x shards the 'parallel' axis across 2 cores).
    grid = _cdiv(rows, tm)
    if grid > 1 and grid % 2 == 1:
        tm_alt = _round_up_32(_cdiv(rows, grid + 1))
        if _cdiv(rows, tm_alt) % 2 == 0:
            tm = tm_alt
    return rows, lanes, tm, n_pad


# ----------------------------------------------------------------------------
# Wrapper (forward pass of Compute_Grad)
# ----------------------------------------------------------------------------
def compute_grad(x, xpred, xobs, mask, *, alpha_obs=1.0, alpha_ae=1.0,
                 grad_type=1, mask_sum=None):
    """Forward pass of Compute_Grad for GradType in {0, 1}.

    mask_sum: optional precomputed sum(mask) (scalar).  In 4DVarNN the mask is
    fixed across solver iterations, so passing it removes a full extra HBM
    pass and a serial dependency in front of the elementwise kernel.
    """
    orig_shape = x.shape
    out_dtype = x.dtype
    n = x.size
    itemsize = jnp.dtype(out_dtype).itemsize

    rows, lanes, tm, n_pad = _choose_layout(n, itemsize, _tile_elem_budget())

    def to_slab(a):
        flat = a.reshape(-1)
        if n_pad != n:
            flat = jnp.pad(flat, (0, n_pad - n))
        return flat.reshape(rows, lanes)

    xf = to_slab(x)
    xpredf = to_slab(xpred)
    xobsf = to_slab(xobs)

    grid = (_cdiv(rows, tm),)
    tile_spec = pl.BlockSpec((tm, lanes), lambda i: (i, 0))
    smem_spec = pl.BlockSpec(memory_space=pltpu.MemorySpace.SMEM)

    # Scoped-VMEM budget: n_streams double-buffered tiles + headroom, kept
    # safely below v7x's 64 MiB physical VMEM.
    n_streams = 5 if grad_type == 1 else 4
    live_bytes = n_streams * 2 * tm * lanes * 4
    vmem_limit = int(min(60 * _MiB, max(32 * _MiB, live_bytes + 16 * _MiB)))
    cparams = pltpu.CompilerParams(dimension_semantics=("parallel",),
                                   vmem_limit_bytes=vmem_limit)
    # TODO(synk): pipeline_mode=pl.Buffered(3) on the input specs is a possible
    # 1-3% win on v6e only; gate on an xprof measurement before enabling.

    alpha_ae = jnp.float32(alpha_ae)
    alpha_obs = jnp.float32(alpha_obs)

    if grad_type == 1:
        maskf = to_slab(mask)
        if mask_sum is None:
            # Extra HBM pass; hoist by passing mask_sum when the mask is fixed.
            mask_sum = jnp.sum(mask, dtype=jnp.float32)
        msum = jnp.asarray(mask_sum, dtype=jnp.float32)
        # Note: sum(mask) == 0 yields inf/nan, same hazard as the torch module.
        coefs = jnp.stack([2.0 * alpha_ae ** 2 / jnp.float32(n),
                           2.0 * alpha_obs ** 2 / msum]).astype(jnp.float32)
        grad2d = pl.pallas_call(
            _grad_type1_kernel,
            out_shape=jax.ShapeDtypeStruct((rows, lanes), out_dtype),
            grid=grid,
            in_specs=[smem_spec, tile_spec, tile_spec, tile_spec, tile_spec],
            out_specs=tile_spec,
            compiler_params=cparams,
        )(coefs, xf, xpredf, xobsf, maskf)
    elif grad_type == 0:
        coefs = jnp.stack([alpha_ae, alpha_obs]).astype(jnp.float32)
        grad2d = pl.pallas_call(
            _grad_type0_kernel,
            out_shape=jax.ShapeDtypeStruct((rows, lanes), out_dtype),
            grid=grid,
            in_specs=[smem_spec, tile_spec, tile_spec, tile_spec],
            out_specs=tile_spec,
            compiler_params=cparams,
        )(coefs, xf, xpredf, xobsf)
    else:
        # TODO(synk): GradType in {2,3,4,5} (L1 term / per-term energy weights /
        # odd-power losses) not implemented in this synthetic kernel.
        raise NotImplementedError(f"GradType {grad_type} not implemented")

    flat = grad2d.reshape(-1)
    if n_pad != n:
        flat = flat[:n]
    return flat.reshape(orig_shape)


# ----------------------------------------------------------------------------
# Pure-JAX references for verification
# ----------------------------------------------------------------------------
def _reference_grad_type1(x, xpred, xobs, mask, alpha_obs=1.0, alpha_ae=1.0):
    def loss_fn(xv):
        loss1 = jnp.mean((xpred - xv) ** 2)
        loss2 = jnp.sum((xobs - xv) ** 2 * mask) / jnp.sum(mask)
        return alpha_ae ** 2 * loss1 + alpha_obs ** 2 * loss2
    return jax.grad(loss_fn)(x)


def _reference_grad_type0(x, xpred, xobs, alpha_obs=1.0, alpha_ae=1.0):
    g1 = xpred - x
    g2 = x - xobs
    g = g1 + g2
    return alpha_ae * g + alpha_obs * g2


if __name__ == "__main__":
    key = jax.random.PRNGKey(0)
    k1, k2, k3, k4 = jax.random.split(key, 4)

    # 1) Small NCHW shapes consistent with the module (single-block path).
    B, C, H, W = 2, 4, 16, 16  # 2048 elements
    x = jax.random.normal(k1, (B, C, H, W), dtype=jnp.float32)
    xpred = jax.random.normal(k2, (B, C, H, W), dtype=jnp.float32)
    xobs = jax.random.normal(k3, (B, C, H, W), dtype=jnp.float32)
    mask = (jax.random.uniform(k4, (B, C, H, W)) > 0.3).astype(jnp.float32)

    grad1 = jax.block_until_ready(compute_grad(x, xpred, xobs, mask, grad_type=1))
    ref1 = _reference_grad_type1(x, xpred, xobs, mask)
    assert jnp.allclose(grad1, ref1, atol=1e-5, rtol=1e-5), "GradType 1 mismatch"

    grad0 = jax.block_until_ready(compute_grad(x, xpred, xobs, mask, grad_type=0))
    ref0 = _reference_grad_type0(x, xpred, xobs)
    assert jnp.allclose(grad0, ref0, atol=1e-5, rtol=1e-5), "GradType 0 mismatch"

    # Precomputed mask_sum path (hoisted reduction).
    grad1b = jax.block_until_ready(
        compute_grad(x, xpred, xobs, mask, grad_type=1,
                     mask_sum=float(jnp.sum(mask))))
    assert jnp.allclose(grad1b, ref1, atol=1e-5, rtol=1e-5), "mask_sum mismatch"

    # 2) Larger shape -> multi-tile pipelined path (grid >= 4 steps).
    B2, C2, H2, W2 = 4, 8, 128, 128  # 524288 elements -> lanes=1024
    xb = jax.random.normal(k1, (B2, C2, H2, W2), dtype=jnp.float32)
    xpb = jax.random.normal(k2, (B2, C2, H2, W2), dtype=jnp.float32)
    xob = jax.random.normal(k3, (B2, C2, H2, W2), dtype=jnp.float32)
    mb = (jax.random.uniform(k4, (B2, C2, H2, W2)) > 0.3).astype(jnp.float32)
    gradb = jax.block_until_ready(compute_grad(xb, xpb, xob, mb, grad_type=1))
    refb = _reference_grad_type1(xb, xpb, xob, mb)
    assert jnp.allclose(gradb, refb, atol=1e-5, rtol=1e-5), "large-shape mismatch"

    # 3) Ragged element count (not a multiple of 128) -> pad-and-slice path.
    shp = (2, 3, 15, 17)  # 1530 elements
    xr = jax.random.normal(k1, shp, dtype=jnp.float32)
    xpr = jax.random.normal(k2, shp, dtype=jnp.float32)
    xor_ = jax.random.normal(k3, shp, dtype=jnp.float32)
    mr = (jax.random.uniform(k4, shp) > 0.3).astype(jnp.float32)
    gradr = jax.block_until_ready(compute_grad(xr, xpr, xor_, mr, grad_type=1))
    refr = _reference_grad_type1(xr, xpr, xor_, mr)
    assert jnp.allclose(gradr, refr, atol=1e-5, rtol=1e-5), "ragged type1 mismatch"
    gradr0 = jax.block_until_ready(compute_grad(xr, xpr, xor_, mr, grad_type=0))
    refr0 = _reference_grad_type0(xr, xpr, xor_)
    assert jnp.allclose(gradr0, refr0, atol=1e-5, rtol=1e-5), "ragged type0 mismatch"

    print("KERNEL_OK")
</pallas_src>

<mosaic_0001>
module attributes {stable_mosaic.version = 11 : i64} {
  func.func @_grad_type1_kernel(%arg0: i32, %arg1: memref<2xf32, #tpu.memory_space<smem>>, %arg2: memref<16x128xf32, #tpu.memory_space<vmem>>, %arg3: memref<16x128xf32, #tpu.memory_space<vmem>>, %arg4: memref<16x128xf32, #tpu.memory_space<vmem>>, %arg5: memref<16x128xf32, #tpu.memory_space<vmem>>, %arg6: memref<16x128xf32, #tpu.memory_space<vmem>>) attributes {dimension_semantics = [#tpu.dimension_semantics<parallel>], iteration_bounds = array<i64: 1>, scalar_prefetch = 0 : i64, scratch_operands = 0 : i64, tpu.core_type = #tpu.core_type<tc>, window_params = [{transform_indices = @transform_0, window_bounds = array<i64: 2>}, {transform_indices = @transform_1, window_bounds = array<i64: 16, 128>}, {transform_indices = @transform_2, window_bounds = array<i64: 16, 128>}, {transform_indices = @transform_3, window_bounds = array<i64: 16, 128>}, {transform_indices = @transform_4, window_bounds = array<i64: 16, 128>}, {transform_indices = @transform_5, window_bounds = array<i64: 16, 128>}]} {
    %c0 = arith.constant 0 : index
    %0 = memref.load %arg1[%c0] : memref<2xf32, #tpu.memory_space<smem>>
    %c1 = arith.constant 1 : index
    %1 = memref.load %arg1[%c1] : memref<2xf32, #tpu.memory_space<smem>>
    %c0_0 = arith.constant 0 : index
    %c0_1 = arith.constant 0 : index
    %2 = vector.load %arg2[%c0_0, %c0_1] : memref<16x128xf32, #tpu.memory_space<vmem>>, vector<16x128xf32>
    %c0_2 = arith.constant 0 : index
    %c0_3 = arith.constant 0 : index
    %3 = vector.load %arg3[%c0_2, %c0_3] : memref<16x128xf32, #tpu.memory_space<vmem>>, vector<16x128xf32>
    %c0_4 = arith.constant 0 : index
    %c0_5 = arith.constant 0 : index
    %4 = vector.load %arg4[%c0_4, %c0_5] : memref<16x128xf32, #tpu.memory_space<vmem>>, vector<16x128xf32>
    %c0_6 = arith.constant 0 : index
    %c0_7 = arith.constant 0 : index
    %5 = vector.load %arg5[%c0_6, %c0_7] : memref<16x128xf32, #tpu.memory_space<vmem>>, vector<16x128xf32>
    %6 = arith.subf %2, %3 : vector<16x128xf32>
    %7 = vector.broadcast %0 : f32 to vector<16x128xf32>
    %8 = arith.mulf %7, %6 : vector<16x128xf32>
    %9 = vector.broadcast %1 : f32 to vector<16x128xf32>
    %10 = arith.mulf %9, %5 : vector<16x128xf32>
    %11 = arith.subf %2, %4 : vector<16x128xf32>
    %12 = arith.mulf %10, %11 : vector<16x128xf32>
    %13 = arith.addf %8, %12 : vector<16x128xf32>
    %c0_8 = arith.constant 0 : index
    %c0_9 = arith.constant 0 : index
    %14 = vector.load %arg6[%c0_8, %c0_9] : memref<16x128xf32, #tpu.memory_space<vmem>>, vector<16x128xf32>
    tpu.vector_store %arg6[%c0_8, %c0_9], %13 {strides = array<i32>} : memref<16x128xf32, #tpu.memory_space<vmem>>, vector<16x128xf32>,
    return
  }
  func.func @transform_0(%arg0: i32) -> i32 {
    %c0_i32 = arith.constant 0 : i32
    %c0_i32_0 = arith.constant 0 : i32
    return %c0_i32 : i32
  }
  func.func @transform_1(%arg0: i32) -> (i32, i32) {
    %c0_i32 = arith.constant 0 : i32
    %c0_i32_0 = arith.constant 0 : i32
    return %arg0, %c0_i32 : i32, i32
  }
  func.func @transform_2(%arg0: i32) -> (i32, i32) {
    %c0_i32 = arith.constant 0 : i32
    %c0_i32_0 = arith.constant 0 : i32
    return %arg0, %c0_i32 : i32, i32
  }
  func.func @transform_3(%arg0: i32) -> (i32, i32) {
    %c0_i32 = arith.constant 0 : i32
    %c0_i32_0 = arith.constant 0 : i32
    return %arg0, %c0_i32 : i32, i32
  }
  func.func @transform_4(%arg0: i32) -> (i32, i32) {
    %c0_i32 = arith.constant 0 : i32
    %c0_i32_0 = arith.constant 0 : i32
    return %arg0, %c0_i32 : i32, i32
  }
  func.func @transform_5(%arg0: i32) -> (i32, i32) {
    %c0_i32 = arith.constant 0 : i32
    %c0_i32_0 = arith.constant 0 : i32
    return %arg0, %c0_i32 : i32, i32
  }
}

</mosaic_0001>

<llo_original>
// kernel: tpu_custom_call.1
$region0: #{tpu_custom_call.1}
  #allocation0 [shape = 'u32[]', space=smem, size = 0x4, offset = 0x4, fixed_abs, tag = 'smem constant byte address 0x4 - core index']
  #allocation1 [shape = 'u32[144,128]{1,0:T(1,128)}', space=vmem, size = 0x12000, scoped, tag = 'internal scratch']
  %s0 = inlined_call_operand.hbm [shape: f32[2], index: 0, kind: input, shape index: {}]
  %s1 = inlined_call_operand.hbm [shape: f32[16,128], index: 1, kind: input, shape index: {}]
  %s2 = inlined_call_operand.hbm [shape: f32[16,128], index: 2, kind: input, shape index: {}]
  %s3 = inlined_call_operand.hbm [shape: f32[16,128], index: 3, kind: input, shape index: {}]
  %s4 = inlined_call_operand.hbm [shape: f32[16,128], index: 4, kind: input, shape index: {}]
  %s5 = inlined_call_operand.hbm [shape: f32[16,128], index: 5, kind: output, shape index: {}]
  %s6 = sld [smem:[#allocation0]]
  $region50: #{tpu_custom_call.1} parent=0
    _
  %s8 = ssub.s32 1, %s6
  %s9 = scalar_select 0, %s8, %s6
  $region1: #{tpu_custom_call.1} parent=0
    #allocation2 [shape = 'u8[512]{0}', space=smem, size = 0x200, scoped, tag = 'input window, operand 0, single buffered']
    #allocation3 [shape = 's32[1]{0}', space=sflag, size = 0x4, scoped, tag = 'scoped memory for tpu_custom_call.1']
    #allocation4 [shape = 's32[1]{0}', space=sflag, size = 0x4, scoped, tag = 'scoped memory for tpu_custom_call.1']
    #allocation5 [shape = 's32[1]{0}', space=sflag, size = 0x4, scoped, tag = 'scoped memory for tpu_custom_call.1']
    #allocation6 [shape = 'u8[8192]{0}', space=vmem, size = 0x2000, scoped, tag = 'input window, operand 1, single buffered']
    #allocation7 [shape = 'u8[8192]{0}', space=vmem, size = 0x2000, scoped, tag = 'input window, operand 2, single buffered']
    #allocation8 [shape = 's32[1]{0}', space=sflag, size = 0x4, scoped, tag = 'scoped memory for tpu_custom_call.1']
    #allocation9 [shape = 'u8[8192]{0}', space=vmem, size = 0x2000, scoped, tag = 'input window, operand 3, single buffered']
    #allocation10 [shape = 'u8[8192]{0}', space=vmem, size = 0x2000, scoped, tag = 'input window, operand 4, single buffered']
    #allocation11 [shape = 's32[1]{0}', space=sflag, size = 0x4, scoped, tag = 'scoped memory for tpu_custom_call.1']
    #allocation12 [shape = 'u8[8192]{0}', space=vmem, size = 0x2000, scoped, tag = 'output window, operand 0, single buffered']
    %10 = vsyncpa [#allocation5], 0
    %11 = vsyncpa [#allocation3], 0
    %12 = vsyncpa [#allocation8], 0
    %13 = vsyncpa [#allocation11], 0
    %14 = vsyncpa [#allocation4], 0
    // Predicated region
    $region2: #{tpu_custom_call.1} parent=1 // pred_check
      _
    $region3: #{tpu_custom_call.1} parent=1 // pred_check_branch
      %16 = sbr.rel (0) target = $region5
    $region4: #{tpu_custom_call.1} parent=1 // pred_region
      %s18 = ssub.s32 16, 16
      %19 = vsyncadd [#allocation5], %s18
      %22 = dma.hbm_to_smem %s0, 16, [#allocation2], [#allocation5]
    $region5: #{tpu_custom_call.1} parent=1 // pred_fallthru
      _
    // Predicated region
    $region6: #{tpu_custom_call.1} parent=1 // pred_check
      _
    $region7: #{tpu_custom_call.1} parent=1 // pred_check_branch
      %24 = sbr.rel (0) target = $region9
    $region8: #{tpu_custom_call.1} parent=1 // pred_region
      %s26 = ssub.s32 256, 256
      %27 = vsyncadd [#allocation3], %s26
      %s28 = sshll.u32 [#allocation6], 4
      %s29 = int_to_ptr.vmem [resolvable:$true] %s28
      %34 = dma.hbm_to_vmem [thread:$0]  %s1, 256, %s29, [#allocation3], 128, 128, 8
    $region9: #{tpu_custom_call.1} parent=1 // pred_fallthru
      _
    // Predicated region
    $region10: #{tpu_custom_call.1} parent=1 // pred_check
      _
    $region11: #{tpu_custom_call.1} parent=1 // pred_check_branch
      %36 = sbr.rel (0) target = $region13
    $region12: #{tpu_custom_call.1} parent=1 // pred_region
      %s38 = ssub.s32 256, 256
      %39 = vsyncadd [#allocation8], %s38
      %s40 = sshll.u32 [#allocation7], 4
      %s41 = int_to_ptr.vmem [resolvable:$true] %s40
      %46 = dma.hbm_to_vmem [thread:$0]  %s2, 256, %s41, [#allocation8], 128, 128, 8
    $region13: #{tpu_custom_call.1} parent=1 // pred_fallthru
      _
    // Predicated region
    $region14: #{tpu_custom_call.1} parent=1 // pred_check
      _
    $region15: #{tpu_custom_call.1} parent=1 // pred_check_branch
      %48 = sbr.rel (0) target = $region17
    $region16: #{tpu_custom_call.1} parent=1 // pred_region
      %s50 = ssub.s32 256, 256
      %51 = vsyncadd [#allocation8], %s50
      %s52 = sshll.u32 [#allocation9], 4
      %s53 = int_to_ptr.vmem [resolvable:$true] %s52
      %58 = dma.hbm_to_vmem [thread:$0]  %s3, 256, %s53, [#allocation8], 128, 128, 8
    $region17: #{tpu_custom_call.1} parent=1 // pred_fallthru
      _
    // Predicated region
    $region18: #{tpu_custom_call.1} parent=1 // pred_check
      _
    $region19: #{tpu_custom_call.1} parent=1 // pred_check_branch
      %60 = sbr.rel (0) target = $region21
    $region20: #{tpu_custom_call.1} parent=1 // pred_region
      %s62 = ssub.s32 256, 256
      %63 = vsyncadd [#allocation11], %s62
      %s64 = sshll.u32 [#allocation10], 4
      %s65 = int_to_ptr.vmem [resolvable:$true] %s64
      %70 = dma.hbm_to_vmem [thread:$0]  %s4, 256, %s65, [#allocation11], 128, 128, 8
    $region21: #{tpu_custom_call.1} parent=1 // pred_fallthru
      _
    // Predicated region
    $region22: #{tpu_custom_call.1} parent=1 // pred_check
      _
    $region23: #{tpu_custom_call.1} parent=1 // pred_check_branch
      %72 = sbr.rel (0) target = $region25
    $region24: #{tpu_custom_call.1} parent=1 // pred_region
      %73 = dma.done [#allocation5], 16
    $region25: #{tpu_custom_call.1} parent=1 // pred_fallthru
      _
    // Predicated region
    $region26: #{tpu_custom_call.1} parent=1 // pred_check
      _
    $region27: #{tpu_custom_call.1} parent=1 // pred_check_branch
      %75 = sbr.rel (0) target = $region29
    $region28: #{tpu_custom_call.1} parent=1 // pred_region
      %76 = dma.done [#allocation3], 256
    $region29: #{tpu_custom_call.1} parent=1 // pred_fallthru
      _
    // Predicated region
    $region30: #{tpu_custom_call.1} parent=1 // pred_check
      _
    $region31: #{tpu_custom_call.1} parent=1 // pred_check_branch
      %78 = sbr.rel (0) target = $region33
    $region32: #{tpu_custom_call.1} parent=1 // pred_region
      %79 = dma.done [#allocation8], 256
    $region33: #{tpu_custom_call.1} parent=1 // pred_fallthru
      _
    // Predicated region
    $region34: #{tpu_custom_call.1} parent=1 // pred_check
      _
    $region35: #{tpu_custom_call.1} parent=1 // pred_check_branch
      %81 = sbr.rel (0) target = $region37
    $region36: #{tpu_custom_call.1} parent=1 // pred_region
      %82 = dma.done [#allocation8], 256
    $region37: #{tpu_custom_call.1} parent=1 // pred_fallthru
      _
    // Predicated region
    $region38: #{tpu_custom_call.1} parent=1 // pred_check
      _
    $region39: #{tpu_custom_call.1} parent=1 // pred_check_branch
      %84 = sbr.rel (0) target = $region41
    $region40: #{tpu_custom_call.1} parent=1 // pred_region
      %85 = dma.done [#allocation11], 256
    $region41: #{tpu_custom_call.1} parent=1 // pred_fallthru
      _
    %86 = sfence
    %s87 = sld [smem:[#allocation2]]
    %s88 = sld [smem:[#allocation2 + $0x1]]
    %v89 = vld [vmem:[#allocation6] sm:$0xff]
    %v90 = vld [vmem:[#allocation6 + $0x8] sm:$0xff]
    %v91 = vld [vmem:[#allocation7] sm:$0xff]
    %v92 = vld [vmem:[#allocation7 + $0x8] sm:$0xff]
    %v93 = vld [vmem:[#allocation9] sm:$0xff]
    %v94 = vld [vmem:[#allocation9 + $0x8] sm:$0xff]
    %v95 = vld [vmem:[#allocation10] sm:$0xff]
    %v96 = vld [vmem:[#allocation10 + $0x8] sm:$0xff]
    %v97 = vsub.f32 %v89, %v91
    %v98 = vsub.f32 %v90, %v92
    %v99 = vstv %s87
    %v100 = vmul.f32 %v99, %v97
    %v101 = vmul.f32 %v99, %v98
    %v102 = vstv %s88
    %v103 = vmul.f32 %v102, %v95
    %v104 = vmul.f32 %v102, %v96
    %v105 = vsub.f32 %v89, %v93
    %v106 = vsub.f32 %v90, %v94
    %v107 = vmul.f32 %v103, %v105
    %v108 = vmul.f32 %v104, %v106
    %v109 = vadd.f32 %v100, %v107
    %v110 = vadd.f32 %v101, %v108
    %111 = vst [vmem:[#allocation12] sm:$0xff] %v109
    %112 = vst [vmem:[#allocation12 + $0x8] sm:$0xff] %v110
    // Predicated region
    $region42: #{tpu_custom_call.1} parent=1 // pred_check
      _
    $region43: #{tpu_custom_call.1} parent=1 // pred_check_branch
      %114 = sbr.rel (0) target = $region45
    $region44: #{tpu_custom_call.1} parent=1 // pred_region
      %s116 = ssub.s32 256, 256
      %117 = vsyncadd [#allocation4], %s116
      %s118 = sshll.u32 [#allocation12], 4
      %s119 = int_to_ptr.vmem [resolvable:$true] %s118
      %124 = dma.vmem_to_hbm [thread:$0]  %s119, 256, %s5, [#allocation4], 128, 128, 8
    $region45: #{tpu_custom_call.1} parent=1 // pred_fallthru
      _
    // Predicated region
    $region46: #{tpu_custom_call.1} parent=1 // pred_check
      _
    $region47: #{tpu_custom_call.1} parent=1 // pred_check_branch
      %126 = sbr.rel (0) target = $region49
    $region48: #{tpu_custom_call.1} parent=1 // pred_region
      %127 = dma.done [#allocation4], 256
    $region49: #{tpu_custom_call.1} parent=1 // pred_fallthru
      _
    %128 = vsyncpa [#allocation3], 1
    %129 = vsyncpa [#allocation8], 1
    %130 = vsyncpa [#allocation11], 1
    %131 = vsyncpa [#allocation4], 1
    %132 = vsyncpa [#allocation5], 1

</llo_original>
